<compile_context>
chip_gen: v7x
topology: tpu7x:2x2x1
jax: 0.10.0
libtpu: 0.0.40
codegen_flags: <defaults>
</compile_context>

<pallas_src>
import functools

import jax
import jax.numpy as jnp
from jax.experimental import pallas as pl
from jax.experimental.pallas import tpu as pltpu


_LANES = 128      # lane width; hidden/output channels live on lanes
_W1_ROWS = 8      # rows 0..Cin-1: conv1 center taps; row Cin: b1 + constant-1 carrier
_TB_MAX = 8192    # max batch-tile rows per grid step (~2.7 MiB double-buffered VMEM)


def _round_up(n, m):
    return ((n + m - 1) // m) * m


def prepare_simclr_params(w1_full, b1, w2_full, b2):
    """One-time packing of both Conv1d layers into a single (8+128, 128) f32 slab.

    w1_full: (H, Cin, 3), b1: (H,), w2_full: (D, H, 3), b2: (D,)
    Only the center tap (index 1) contributes for a length-1, zero-padded sequence.

    Layout:
      rows  [0:Cin, 0:H]   = W1[:, :, 1].T
      row   [Cin,   0:H]   = b1      (picked up by the constant-1 input column)
      entry [Cin,   H]     = 1.0     (constant-1 carrier used to fold b2)
      rows  [8:8+H, 0:D]   = W2[:, :, 1].T
      row   [8+H,   0:D]   = b2
    Everything else is zero (mathematically inert padding).
    """
    H, Cin, _ = w1_full.shape
    D = w2_full.shape[0]
    assert Cin <= _W1_ROWS - 1, "Cin must fit in the layer-1 row block"
    assert H + 1 <= _LANES and D <= _LANES, "hidden/output dims must fit in 128 lanes"

    w = jnp.zeros((_W1_ROWS + _LANES, _LANES), jnp.float32)
    w = w.at[0:Cin, 0:H].set(jnp.transpose(w1_full[:, :, 1]).astype(jnp.float32))
    w = w.at[Cin, 0:H].set(b1.astype(jnp.float32))
    w = w.at[Cin, H].set(1.0)
    w = w.at[_W1_ROWS:_W1_ROWS + H, 0:D].set(
        jnp.transpose(w2_full[:, :, 1]).astype(jnp.float32))
    w = w.at[_W1_ROWS + H, 0:D].set(b2.astype(jnp.float32))
    return w


def _simclr_kernel(x_ref, w_ref, o_ref):
    # Layer 1 on the MXU: x columns are [x_0..x_{Cin-1}, 1, 0...]; the weight
    # row at index Cin carries b1 (lanes 0:H) and the 1.0 carrier at lane H.
    # The extra K=8 MXU push piggybacks on the layer-2 push for ~free.
    h = jnp.dot(x_ref[...], w_ref[0:_W1_ROWS, :],
                preferred_element_type=jnp.float32)          # (tb, 128)
    h = jnp.maximum(h, 0.0)                                   # ReLU; lane H stays 1.0
    # Layer 2 on the MXU; b2 is folded via the constant-1 carrier lane.
    y = jnp.dot(h, w_ref[_W1_ROWS:, :],
                preferred_element_type=jnp.float32)           # (tb, 128)
    # Store only the useful output lanes (output array is (B, out_dim)).
    o_ref[...] = y[:, :o_ref.shape[1]]


@functools.partial(jax.jit, static_argnames=("out_dim",))
def simclr_forward(x, packed_w, *, out_dim):
    """x: (B, Cin) float32; packed_w: output of prepare_simclr_params."""
    B, Cin = x.shape
    assert Cin <= _W1_ROWS - 1
    assert 0 < out_dim <= _LANES

    # [x | 1 | 0-pad] -> (B, 8). Single cheap concat; the ones column drives the
    # b1 row and the b2 carrier. No batch padding and no trailing output slice:
    # Pallas masks the partial last block on read and write.
    ones = jnp.ones((B, 1), jnp.float32)
    zpad = jnp.zeros((B, _W1_ROWS - Cin - 1), jnp.float32)
    x_p = jnp.concatenate([x.astype(jnp.float32), ones, zpad], axis=1)

    # Batch tiling: big tiles to amortize per-step overhead, but at least two
    # grid steps for non-trivial batches so both v7x TensorCores get work.
    B8 = _round_up(B, 8)
    if B8 <= 16:
        tb = B8
    else:
        tb = min(_TB_MAX, _round_up(pl.cdiv(B8, 2), 8))
    grid = (pl.cdiv(B, tb),)

    flops = 2 * B * (_W1_ROWS * _LANES + _LANES * _LANES)
    bytes_accessed = 4 * (B * _W1_ROWS + packed_w.size + B * out_dim)

    return pl.pallas_call(
        _simclr_kernel,
        out_shape=jax.ShapeDtypeStruct((B, out_dim), jnp.float32),
        grid=grid,
        in_specs=[
            pl.BlockSpec((tb, _W1_ROWS), lambda i: (i, 0)),
            pl.BlockSpec((_W1_ROWS + _LANES, _LANES), lambda i: (0, 0)),
        ],
        out_specs=pl.BlockSpec((tb, out_dim), lambda i: (i, 0)),
        compiler_params=pltpu.CompilerParams(
            dimension_semantics=("parallel",),
            vmem_limit_bytes=32 * 1024 * 1024),
        cost_estimate=pl.CostEstimate(
            flops=flops, transcendentals=0, bytes_accessed=bytes_accessed),
    )(x_p, packed_w)
    # AdaptiveAvgPool1d(1) over a length-1 axis and Flatten are identities.


if __name__ == "__main__":
    INPUT_DIM, HIDDEN_DIM, OUTPUT_DIM = 3, 64, 32
    BATCH = 2

    key = jax.random.PRNGKey(0)
    k_x, k_w1, k_b1, k_w2, k_b2 = jax.random.split(key, 5)

    # Deterministic synthetic parameters (shapes match nn.Conv1d weights/biases).
    x = jax.random.normal(k_x, (BATCH, INPUT_DIM), jnp.float32)
    w1 = jax.random.normal(k_w1, (HIDDEN_DIM, INPUT_DIM, 3), jnp.float32) * 0.1
    b1 = jax.random.normal(k_b1, (HIDDEN_DIM,), jnp.float32) * 0.1
    w2 = jax.random.normal(k_w2, (OUTPUT_DIM, HIDDEN_DIM, 3), jnp.float32) * 0.1
    b2 = jax.random.normal(k_b2, (OUTPUT_DIM,), jnp.float32) * 0.1

    # One-time weight packing (hoisted out of the per-call forward path).
    packed_w = jax.block_until_ready(prepare_simclr_params(w1, b1, w2, b2))

    out = simclr_forward(x, packed_w, out_dim=OUTPUT_DIM)
    out = jax.block_until_ready(out)

    # Pure-JAX reference (same center-tap math as the PyTorch module).
    h_ref = jnp.maximum(x @ w1[:, :, 1].T + b1, 0.0)
    y_ref = h_ref @ w2[:, :, 1].T + b2
    assert out.shape == (BATCH, OUTPUT_DIM)
    assert jnp.allclose(out, y_ref, atol=1e-4, rtol=1e-4), "mismatch vs reference"

    print("KERNEL_OK")
</pallas_src>

<mosaic_0001>
module attributes {stable_mosaic.version = 11 : i64} {
  func.func @_simclr_kernel(%arg0: i32, %arg1: memref<8x8xf32, #tpu.memory_space<vmem>>, %arg2: memref<136x128xf32, #tpu.memory_space<vmem>>, %arg3: memref<8x32xf32, #tpu.memory_space<vmem>>) attributes {dimension_semantics = [#tpu.dimension_semantics<parallel>], iteration_bounds = array<i64: 1>, scalar_prefetch = 0 : i64, scratch_operands = 0 : i64, tpu.core_type = #tpu.core_type<tc>, window_params = [{transform_indices = @transform_0, window_bounds = array<i64: 8, 8>}, {pipeline_mode = #tpu.pipeline_mode<synchronous>, transform_indices = @transform_1, window_bounds = array<i64: 136, 128>}, {transform_indices = @transform_2, window_bounds = array<i64: 8, 32>}]} {
    %c0 = arith.constant 0 : index
    %c0_0 = arith.constant 0 : index
    %0 = vector.load %arg1[%c0, %c0_0] : memref<8x8xf32, #tpu.memory_space<vmem>>, vector<8x8xf32>
    %c0_1 = arith.constant 0 : index
    %c0_2 = arith.constant 0 : index
    %1 = vector.load %arg2[%c0_1, %c0_2] : memref<136x128xf32, #tpu.memory_space<vmem>>, vector<8x128xf32>
    %cst = arith.constant dense<0.000000e+00> : vector<8x128xf32>
    %2 = tpu.matmul %0, %1, %cst {dimension_numbers = #tpu.dot_dimension_numbers<[1], [0], [0], [1], [0, 0, 1, 1], [], []>} : vector<8x8xf32>, vector<8x128xf32>, vector<8x128xf32> -> vector<8x128xf32>
    %cst_3 = arith.constant 0.000000e+00 : f32
    %3 = vector.broadcast %cst_3 : f32 to vector<8x128xf32>
    %4 = arith.maximumf %2, %3 : vector<8x128xf32>
    %c8 = arith.constant 8 : index
    %c0_4 = arith.constant 0 : index
    %5 = vector.load %arg2[%c8, %c0_4] : memref<136x128xf32, #tpu.memory_space<vmem>>, vector<128x128xf32>
    %cst_5 = arith.constant dense<0.000000e+00> : vector<8x128xf32>
    %6 = tpu.matmul %4, %5, %cst_5 {dimension_numbers = #tpu.dot_dimension_numbers<[1], [0], [0], [1], [0, 0, 1, 1], [], []>} : vector<8x128xf32>, vector<128x128xf32>, vector<8x128xf32> -> vector<8x128xf32>
    %7 = vector.extract_strided_slice %6 {offsets = [0, 0], sizes = [8, 32], strides = [1, 1]} : vector<8x128xf32> to vector<8x32xf32>
    %c0_6 = arith.constant 0 : index
    %c0_7 = arith.constant 0 : index
    %8 = vector.load %arg3[%c0_6, %c0_7] : memref<8x32xf32, #tpu.memory_space<vmem>>, vector<8x32xf32>
    tpu.vector_store %arg3[%c0_6, %c0_7], %7 {strides = array<i32>} : memref<8x32xf32, #tpu.memory_space<vmem>>, vector<8x32xf32>,
    return
  }
  func.func @transform_0(%arg0: i32) -> (i32, i32) {
    %c0_i32 = arith.constant 0 : i32
    %c0_i32_0 = arith.constant 0 : i32
    return %arg0, %c0_i32 : i32, i32
  }
  func.func @transform_1(%arg0: i32) -> (i32, i32) {
    %c0_i32 = arith.constant 0 : i32
    %c0_i32_0 = arith.constant 0 : i32
    %c0_i32_1 = arith.constant 0 : i32
    return %c0_i32, %c0_i32_0 : i32, i32
  }
  func.func @transform_2(%arg0: i32) -> (i32, i32) {
    %c0_i32 = arith.constant 0 : i32
    %c0_i32_0 = arith.constant 0 : i32
    return %arg0, %c0_i32 : i32, i32
  }
}

</mosaic_0001>

<llo_original>
// kernel: simclr_forward.1
$region0: #{simclr_forward.1}
  #allocation0 [shape = 'u32[]', space=smem, size = 0x4, offset = 0x4, fixed_abs, tag = 'smem constant byte address 0x4 - core index']
  #allocation1 [shape = 'u32[144,128]{1,0:T(1,128)}', space=vmem, size = 0x12000, scoped, tag = 'internal scratch']
  %s0 = inlined_call_operand.vmem [shape: f32[2,8], index: 0, kind: input, shape index: {}]
  %s1 = inlined_call_operand.hbm [shape: f32[136,128], index: 1, kind: input, shape index: {}]
  %s2 = inlined_call_operand.hbm [shape: f32[2,32], index: 2, kind: output, shape index: {}]
  %s3 = sld [smem:[#allocation0]]
  $region22: #{simclr_forward.1} parent=0
    _
  %s5 = ssub.s32 1, %s3
  %s6 = scalar_select 0, %s5, %s3
  $region1: #{simclr_forward.1} parent=0
    #allocation2 [shape = 'u8[69632]{0}', space=vmem, size = 0x11000, scoped, tag = 'input window, operand 1, single buffered']
    #allocation3 [shape = 's32[1]{0}', space=sflag, size = 0x4, scoped, tag = 'scoped memory for simclr_forward.1']
    #allocation4 [shape = 's32[1]{0}', space=sflag, size = 0x4, scoped, tag = 'scoped memory for simclr_forward.1']
    #allocation5 [shape = 'u8[4096]{0}', space=vmem, size = 0x1000, scoped, tag = 'output window, operand 0, single buffered']
    %7 = vsyncpa [#allocation3], 0
    %8 = vsyncpa [#allocation4], 0
    // Predicated region
    $region2: #{simclr_forward.1} parent=1 // pred_check
      _
    $region3: #{simclr_forward.1} parent=1 // pred_check_branch
      %10 = sbr.rel (0) target = $region5
    $region4: #{simclr_forward.1} parent=1 // pred_region
      _
    $region5: #{simclr_forward.1} parent=1 // pred_fallthru
      _
    // Predicated region
    $region6: #{simclr_forward.1} parent=1 // pred_check
      _
    $region7: #{simclr_forward.1} parent=1 // pred_check_branch
      %12 = sbr.rel (0) target = $region9
    $region8: #{simclr_forward.1} parent=1 // pred_region
      %s14 = ssub.s32 2176, 2176
      %15 = vsyncadd [#allocation3], %s14
      %s16 = sshll.u32 [#allocation2], 4
      %s17 = int_to_ptr.vmem [resolvable:$true] %s16
      %22 = dma.hbm_to_vmem [thread:$0]  %s1, 2176, %s17, [#allocation3], 128, 128, 8
    $region9: #{simclr_forward.1} parent=1 // pred_fallthru
      _
    // Predicated region
    $region10: #{simclr_forward.1} parent=1 // pred_check
      _
    $region11: #{simclr_forward.1} parent=1 // pred_check_branch
      %24 = sbr.rel (0) target = $region13
    $region12: #{simclr_forward.1} parent=1 // pred_region
      %25 = dma.done [#allocation3], 2176
    $region13: #{simclr_forward.1} parent=1 // pred_fallthru
      _
    %v26 = vld [vmem:[%s0] sm:$0xff]
    %v27 = vld [vmem:[#allocation2] sm:$0xff]
    %vm28 = vcmask 64512
    %v30 = vsel %vm28, %v26, 0
    %32 = vmatprep.subr.mxu0 0.0
    %33 = vmatpush1.msra.mxu0 %v27
    %34 = vmatprep.subr.mxu0 0.0
    %35 = vmatpush1.msra.mxu0 0.0
    %36 = vmatprep.subr.mxu0 0.0
    %37 = vmatpush1.msra.mxu0 0.0
    %38 = vmatprep.subr.mxu0 0.0
    %39 = vmatpush1.msra.mxu0 0.0
    %40 = vmatprep.subr.mxu0 0.0
    %41 = vmatpush1.msra.mxu0 0.0
    %42 = vmatprep.subr.mxu0 0.0
    %43 = vmatpush1.msra.mxu0 0.0
    %44 = vmatprep.subr.mxu0 0.0
    %45 = vmatpush1.msra.mxu0 0.0
    %46 = vmatprep.subr.mxu0 0.0
    %47 = vmatpush1.msra.mxu0 0.0
    %48 = vmatprep.subr.mxu0 0.0
    %49 = vmatpush1.msra.mxu0 0.0
    %50 = vmatprep.subr.mxu0 0.0
    %51 = vmatpush1.msra.mxu0 0.0
    %52 = vmatprep.subr.mxu0 0.0
    %53 = vmatpush1.msra.mxu0 0.0
    %54 = vmatprep.subr.mxu0 0.0
    %55 = vmatpush1.msra.mxu0 0.0
    %56 = vmatprep.subr.mxu0 0.0
    %57 = vmatpush1.msra.mxu0 0.0
    %58 = vmatprep.subr.mxu0 0.0
    %59 = vmatpush1.msra.mxu0 0.0
    %60 = vmatprep.subr.mxu0 0.0
    %61 = vmatpush1.msra.mxu0 0.0
    %62 = vmatprep.subr.mxu0 0.0
    %63 = vmatpush1.msra.mxu0 0.0
    %64 = vmatprep.subr.mxu0 0.0
    %65 = vmatpush1.msra.mxu0 0.0
    %66 = vmatprep.subr.mxu0 0.0
    %67 = vmatpush1.msra.mxu0 0.0
    %68 = vmatprep.subr.mxu0 0.0
    %69 = vmatpush1.msra.mxu0 0.0
    %70 = vmatprep.subr.mxu0 0.0
    %71 = vmatpush1.msra.mxu0 0.0
    %72 = vmatprep.subr.mxu0 0.0
    %73 = vmatpush1.msra.mxu0 0.0
    %74 = vmatprep.subr.mxu0 0.0
    %75 = vmatpush1.msra.mxu0 0.0
    %76 = vmatprep.subr.mxu0 0.0
    %77 = vmatpush1.msra.mxu0 0.0
    %78 = vmatprep.subr.mxu0 0.0
    %79 = vmatpush1.msra.mxu0 0.0
    %80 = vmatprep.subr.mxu0 0.0
    %81 = vmatpush1.msra.mxu0 0.0
    %82 = vmatprep.subr.mxu0 0.0
    %83 = vmatpush1.msra.mxu0 0.0
    %84 = vmatprep.subr.mxu0 0.0
    %85 = vmatpush1.msra.mxu0 0.0
    %86 = vmatprep.subr.mxu0 0.0
    %87 = vmatpush1.msra.mxu0 0.0
    %88 = vmatprep.subr.mxu0 0.0
    %89 = vmatpush1.msra.mxu0 0.0
    %90 = vmatprep.subr.mxu0 0.0
    %91 = vmatpush1.msra.mxu0 0.0
    %92 = vmatprep.subr.mxu0 0.0
    %93 = vmatpush1.msra.mxu0 0.0
    %94 = vmatprep.subr.mxu0 0.0
    %95 = vmatpush1.msra.mxu0 0.0
    %96 = vmatprep.mubr.f32.mxu0 0.0
    %97 = vmatmul.mubr.f32.gmra.mrb[0].mxu0 %v30
    %v98 = vpop.f32.mrb[0].mxu0
    %v99 = vadd.f32 0.0, %v98
    %v100 = vpop.f32.mrb[0].mxu0
    %101 = vdwg.mxu0
    %v102 = vmax.f32 %v99, 0.0
    %v103 = vld [vmem:[#allocation2 + $0x8] sm:$0xff]
    %v104 = vld [vmem:[#allocation2 + $0x10] sm:$0xff]
    %v105 = vld [vmem:[#allocation2 + $0x18] sm:$0xff]
    %v106 = vld [vmem:[#allocation2 + $0x20] sm:$0xff]
    %v107 = vld [vmem:[#allocation2 + $0x28] sm:$0xff]
    %v108 = vld [vmem:[#allocation2 + $0x30] sm:$0xff]
    %v109 = vld [vmem:[#allocation2 + $0x38] sm:$0xff]
    %v110 = vld [vmem:[#allocation2 + $0x40] sm:$0xff]
    %v111 = vld [vmem:[#allocation2 + $0x48] sm:$0xff]
    %v112 = vld [vmem:[#allocation2 + $0x50] sm:$0xff]
    %v113 = vld [vmem:[#allocation2 + $0x58] sm:$0xff]
    %v114 = vld [vmem:[#allocation2 + $0x60] sm:$0xff]
    %v115 = vld [vmem:[#allocation2 + $0x68] sm:$0xff]
    %v116 = vld [vmem:[#allocation2 + $0x70] sm:$0xff]
    %v117 = vld [vmem:[#allocation2 + $0x78] sm:$0xff]
    %v118 = vld [vmem:[#allocation2 + $0x80] sm:$0xff]
    %119 = vmatprep.subr.mxu0 0.0
    %120 = vmatpush1.msra.mxu0 %v103
    %121 = vmatprep.subr.mxu0 0.0
    %122 = vmatpush1.msra.mxu0 %v104
    %123 = vmatprep.subr.mxu0 0.0
    %124 = vmatpush1.msra.mxu0 %v105
    %125 = vmatprep.subr.mxu0 0.0
    %126 = vmatpush1.msra.mxu0 %v106
    %127 = vmatprep.subr.mxu0 0.0
    %128 = vmatpush1.msra.mxu0 %v107
    %129 = vmatprep.subr.mxu0 0.0
    %130 = vmatpush1.msra.mxu0 %v108
    %131 = vmatprep.subr.mxu0 0.0
    %132 = vmatpush1.msra.mxu0 %v109
    %133 = vmatprep.subr.mxu0 0.0
    %134 = vmatpush1.msra.mxu0 %v110
    %135 = vmatprep.subr.mxu0 0.0
    %136 = vmatpush1.msra.mxu0 %v111
    %137 = vmatprep.subr.mxu0 0.0
    %138 = vmatpush1.msra.mxu0 %v112
    %139 = vmatprep.subr.mxu0 0.0
    %140 = vmatpush1.msra.mxu0 %v113
    %141 = vmatprep.subr.mxu0 0.0
    %142 = vmatpush1.msra.mxu0 %v114
    %143 = vmatprep.subr.mxu0 0.0
    %144 = vmatpush1.msra.mxu0 %v115
    %145 = vmatprep.subr.mxu0 0.0
    %146 = vmatpush1.msra.mxu0 %v116
    %147 = vmatprep.subr.mxu0 0.0
    %148 = vmatpush1.msra.mxu0 %v117
    %149 = vmatprep.subr.mxu0 0.0
    %150 = vmatpush1.msra.mxu0 %v118
    %151 = vmatprep.subr.mxu0 0.0
    %152 = vmatpush1.msra.mxu0 0.0
    %153 = vmatprep.subr.mxu0 0.0
    %154 = vmatpush1.msra.mxu0 0.0
    %155 = vmatprep.subr.mxu0 0.0
    %156 = vmatpush1.msra.mxu0 0.0
    %157 = vmatprep.subr.mxu0 0.0
    %158 = vmatpush1.msra.mxu0 0.0
    %159 = vmatprep.subr.mxu0 0.0
    %160 = vmatpush1.msra.mxu0 0.0
    %161 = vmatprep.subr.mxu0 0.0
    %162 = vmatpush1.msra.mxu0 0.0
    %163 = vmatprep.subr.mxu0 0.0
    %164 = vmatpush1.msra.mxu0 0.0
    %165 = vmatprep.subr.mxu0 0.0
    %166 = vmatpush1.msra.mxu0 0.0
    %167 = vmatprep.subr.mxu0 0.0
    %168 = vmatpush1.msra.mxu0 0.0
    %169 = vmatprep.subr.mxu0 0.0
    %170 = vmatpush1.msra.mxu0 0.0
    %171 = vmatprep.subr.mxu0 0.0
    %172 = vmatpush1.msra.mxu0 0.0
    %173 = vmatprep.subr.mxu0 0.0
    %174 = vmatpush1.msra.mxu0 0.0
    %175 = vmatprep.subr.mxu0 0.0
    %176 = vmatpush1.msra.mxu0 0.0
    %177 = vmatprep.subr.mxu0 0.0
    %178 = vmatpush1.msra.mxu0 0.0
    %179 = vmatprep.subr.mxu0 0.0
    %180 = vmatpush1.msra.mxu0 0.0
    %181 = vmatprep.subr.mxu0 0.0
    %182 = vmatpush1.msra.mxu0 0.0
    %183 = vmatprep.mubr.f32.mxu0 0.0
    %184 = vmatmul.mubr.f32.gmra.mrb[0].mxu0 %v102
    %v185 = vpop.f32.mrb[0].mxu0
    %v186 = vadd.f32 0.0, %v185
    %v187 = vpop.f32.mrb[0].mxu0
    %188 = vdwg.mxu0
    %vm189 = vcmask 261120
    %190 = vst.msk [vmem:[#allocation5] sm:$0xff] %vm189, %v186
    // Predicated region
    $region14: #{simclr_forward.1} parent=1 // pred_check
      _
    $region15: #{simclr_forward.1} parent=1 // pred_check_branch
      %192 = sbr.rel (0) target = $region17
    $region16: #{simclr_forward.1} parent=1 // pred_region
      %s194 = ssub.s32 128, 32
      %195 = vsyncadd [#allocation4], %s194
      %s196 = sshll.u32 [#allocation5], 4
      %s197 = int_to_ptr.vmem [resolvable:$true] %s196
      %202 = dma.vmem_to_hbm [thread:$0]  %s197, 32, %s2, [#allocation4], 32, 32, 2
    $region17: #{simclr_forward.1} parent=1 // pred_fallthru
      _
    // Predicated region
    $region18: #{simclr_forward.1} parent=1 // pred_check
      _
    $region19: #{simclr_forward.1} parent=1 // pred_check_branch
      %204 = sbr.rel (0) target = $region21
    $region20: #{simclr_forward.1} parent=1 // pred_region
      %205 = dma.done [#allocation4], 128
    $region21: #{simclr_forward.1} parent=1 // pred_fallthru
      _
    %206 = vsyncpa [#allocation3], 1
    %207 = vsyncpa [#allocation4], 1

</llo_original>
